<compile_context>
chip_gen: v5e
topology: v5e:2x2
jax: 0.10.0
libtpu: 0.0.40
codegen_flags: <defaults>
</compile_context>

<pallas_src>
import jax
import jax.numpy as jnp
from jax.experimental import pallas as pl
from jax.experimental.pallas import tpu as pltpu


def _gaussian_policy_kernel(st_ref, w1_ref, b1_ref, w2_ref, b2_ref, mut_ref):
    """One batch tile (batch on lanes): mu^T = W2 @ relu(W1 @ state^T + b1) + b2.

    st_ref : (state_dim, tb)      streamed batch tile (lane-dense)
    w1_ref : (hidden, state_dim)  torch fc1.weight, VMEM-resident
    b1_ref : (hidden, 1)
    w2_ref : (action, hidden)     torch fc2.weight, VMEM-resident
    b2_ref : (action, 1)
    mut_ref: (action, tb)         lane-dense output tile
    """
    h = jnp.dot(w1_ref[...], st_ref[...],
                preferred_element_type=jnp.float32) + b1_ref[...]
    h = jnp.maximum(h, 0.0)
    mu_t = jnp.dot(w2_ref[...], h,
                   preferred_element_type=jnp.float32) + b2_ref[...]
    mut_ref[...] = mu_t.astype(mut_ref.dtype)


def _round_up(x, m):
    return ((x + m - 1) // m) * m


def _gaussian_policy_pallas(state, w1, b1, w2, b2, *, max_block_b=4096):
    """Pallas path: mu = relu(state @ W1^T + b1) @ W2^T + b2, batch on lanes."""
    B, state_dim = state.shape
    hidden_dim, _ = w1.shape
    action_dim, _ = w2.shape

    # Batch tile (lane axis): either the whole batch (one block == full dim is
    # always layout-legal) or ceil(B/2) rounded to 128 lanes so large batches
    # run in exactly 2 "parallel" steps (v7x megacore split), capped for very
    # large B.
    if B <= 256:
        tb = B
    else:
        tb = min(_round_up(pl.cdiv(B, 2), 128), max_block_b)
    grid = (pl.cdiv(B, tb),)

    state_t = state.astype(jnp.float32).T                    # (state_dim, B)
    w1f = w1.astype(jnp.float32)                              # (hidden, state)
    w2f = w2.astype(jnp.float32)                              # (action, hidden)
    b1_col = b1.reshape(hidden_dim, 1).astype(jnp.float32)
    b2_col = b2.reshape(action_dim, 1).astype(jnp.float32)

    # Weights/biases: constant index_map -> fetched once, VMEM-resident.
    resident = lambda shape: pl.BlockSpec(shape, lambda i: (0, 0))

    nbytes = lambda a: a.size * a.dtype.itemsize
    cost = pl.CostEstimate(
        flops=2 * B * (state_dim * hidden_dim + hidden_dim * action_dim),
        transcendentals=0,
        bytes_accessed=(nbytes(state_t) + nbytes(w1f) + nbytes(b1_col)
                        + nbytes(w2f) + nbytes(b2_col) + B * action_dim * 4),
    )

    mu_t = pl.pallas_call(
        _gaussian_policy_kernel,
        out_shape=jax.ShapeDtypeStruct((action_dim, B), jnp.float32),
        grid=grid,
        in_specs=[
            pl.BlockSpec((state_dim, tb), lambda i: (0, i)),   # streamed tile
            resident((hidden_dim, state_dim)),
            resident((hidden_dim, 1)),
            resident((action_dim, hidden_dim)),
            resident((action_dim, 1)),
        ],
        out_specs=pl.BlockSpec((action_dim, tb), lambda i: (0, i)),
        compiler_params=pltpu.CompilerParams(
            dimension_semantics=("parallel",),   # megacore split on v7x
            vmem_limit_bytes=32 * 1024 * 1024,   # explicit (raises v5e default)
        ),
        cost_estimate=cost,
    )(state_t, w1f, b1_col, w2f, b2_col)

    return mu_t.T                                             # (B, action_dim)


def gaussian_policy_forward(state, w1, b1, w2, b2, log_std, *,
                            max_block_b=4096, min_pallas_batch=512,
                            force_pallas=False):
    """Returns (mu, std) — the parameters of Normal(mu, std).

    state:   (B, state_dim)           float32
    w1:      (hidden_dim, state_dim)  torch fc1.weight layout
    b1:      (hidden_dim,)
    w2:      (action_dim, hidden_dim) torch fc2.weight layout
    b2:      (action_dim,)
    log_std: (action_dim,)

    mu:  (B, action_dim) float32
    std: (action_dim,)   float32 (batch-independent, broadcast by the consumer)
    """
    B = state.shape[0]
    std = jnp.exp(log_std)   # batch-independent: computed once, outside kernel

    if B < min_pallas_batch and not force_pallas:
        # Tiny-batch inference path: overhead-bound, so a plain XLA dot chain
        # is as fast or faster than a pallas_call dispatch (perf review #8).
        h = jnp.maximum(state @ w1.T + b1, 0.0)
        mu = h @ w2.T + b2
        return mu, std

    mu = _gaussian_policy_pallas(state, w1, b1, w2, b2, max_block_b=max_block_b)
    return mu, std


def init_params(key, state_dim, hidden_dim, action_dim):
    """Deterministic parameter init mirroring nn.Linear (torch (out, in) layout)."""
    k1, k2, k3, k4 = jax.random.split(key, 4)
    lim1 = 1.0 / jnp.sqrt(state_dim)
    lim2 = 1.0 / jnp.sqrt(hidden_dim)
    w1 = jax.random.uniform(k1, (hidden_dim, state_dim), jnp.float32, -lim1, lim1)
    b1 = jax.random.uniform(k2, (hidden_dim,), jnp.float32, -lim1, lim1)
    w2 = jax.random.uniform(k3, (action_dim, hidden_dim), jnp.float32, -lim2, lim2)
    b2 = jax.random.uniform(k4, (action_dim,), jnp.float32, -lim2, lim2)
    log_std = -0.5 * jnp.ones((action_dim,), jnp.float32)
    return w1, b1, w2, b2, log_std


if __name__ == "__main__":
    # Small shapes consistent with the module: state_dim=16, hidden_dim=32,
    # action_dim=8, batch=2.
    B, STATE_DIM, HIDDEN_DIM, ACTION_DIM = 2, 16, 32, 8

    key = jax.random.PRNGKey(0)
    k_state, k_state_big, k_params = jax.random.split(key, 3)
    state = jax.random.normal(k_state, (B, STATE_DIM), jnp.float32)
    w1, b1, w2, b2, log_std = init_params(k_params, STATE_DIM, HIDDEN_DIM, ACTION_DIM)

    def reference_mu(s):
        h = jnp.maximum(s @ w1.T + b1, 0.0)
        return h @ w2.T + b2

    # --- tiny batch forced through the Pallas kernel (single full block) ---
    mu, std = gaussian_policy_forward(state, w1, b1, w2, b2, log_std,
                                      force_pallas=True)
    jax.block_until_ready((mu, std))
    assert mu.shape == (B, ACTION_DIM) and std.shape == (ACTION_DIM,)
    assert jnp.allclose(mu, reference_mu(state), atol=1e-5, rtol=1e-5)
    assert jnp.allclose(std, jnp.exp(log_std), atol=1e-6, rtol=1e-6)

    # --- tiny batch via default dispatch (plain XLA path, no kernel launch) ---
    mu_small, _ = gaussian_policy_forward(state, w1, b1, w2, b2, log_std)
    jax.block_until_ready(mu_small)
    assert jnp.allclose(mu_small, reference_mu(state), atol=1e-5, rtol=1e-5)

    # --- large batch: lane-dense transposed kernel, 2 tiles (v7x megacore) ---
    B_BIG = 1024
    state_big = jax.random.normal(k_state_big, (B_BIG, STATE_DIM), jnp.float32)
    mu_big, _ = gaussian_policy_forward(state_big, w1, b1, w2, b2, log_std)
    jax.block_until_ready(mu_big)
    assert mu_big.shape == (B_BIG, ACTION_DIM)
    assert jnp.allclose(mu_big, reference_mu(state_big), atol=1e-4, rtol=1e-4)

    print("KERNEL_OK")
</pallas_src>

<mosaic_0001>
module attributes {stable_mosaic.version = 11 : i64} {
  func.func @_gaussian_policy_kernel(%arg0: i32, %arg1: memref<16x2xf32, #tpu.memory_space<vmem>>, %arg2: memref<32x16xf32, #tpu.memory_space<vmem>>, %arg3: memref<32x1xf32, #tpu.memory_space<vmem>>, %arg4: memref<8x32xf32, #tpu.memory_space<vmem>>, %arg5: memref<8x1xf32, #tpu.memory_space<vmem>>, %arg6: memref<8x2xf32, #tpu.memory_space<vmem>>) attributes {dimension_semantics = [#tpu.dimension_semantics<parallel>], iteration_bounds = array<i64: 1>, scalar_prefetch = 0 : i64, scratch_operands = 0 : i64, tpu.core_type = #tpu.core_type<tc>, window_params = [{transform_indices = @transform_0, window_bounds = array<i64: 16, 2>}, {pipeline_mode = #tpu.pipeline_mode<synchronous>, transform_indices = @transform_1, window_bounds = array<i64: 32, 16>}, {pipeline_mode = #tpu.pipeline_mode<synchronous>, transform_indices = @transform_2, window_bounds = array<i64: 32, 1>}, {pipeline_mode = #tpu.pipeline_mode<synchronous>, transform_indices = @transform_3, window_bounds = array<i64: 8, 32>}, {pipeline_mode = #tpu.pipeline_mode<synchronous>, transform_indices = @transform_4, window_bounds = array<i64: 8, 1>}, {transform_indices = @transform_5, window_bounds = array<i64: 8, 2>}]} {
    %c0 = arith.constant 0 : index
    %c0_0 = arith.constant 0 : index
    %0 = vector.load %arg2[%c0, %c0_0] : memref<32x16xf32, #tpu.memory_space<vmem>>, vector<32x16xf32>
    %c0_1 = arith.constant 0 : index
    %c0_2 = arith.constant 0 : index
    %1 = vector.load %arg1[%c0_1, %c0_2] : memref<16x2xf32, #tpu.memory_space<vmem>>, vector<16x2xf32>
    %cst = arith.constant dense<0.000000e+00> : vector<32x2xf32>
    %2 = tpu.matmul %0, %1, %cst {dimension_numbers = #tpu.dot_dimension_numbers<[1], [0], [0], [1], [0, 0, 1, 1], [], []>} : vector<32x16xf32>, vector<16x2xf32>, vector<32x2xf32> -> vector<32x2xf32>
    %c0_3 = arith.constant 0 : index
    %c0_4 = arith.constant 0 : index
    %3 = vector.load %arg3[%c0_3, %c0_4] : memref<32x1xf32, #tpu.memory_space<vmem>>, vector<32x1xf32>
    %4 = vector.broadcast %3 : vector<32x1xf32> to vector<32x2xf32>
    %5 = arith.addf %2, %4 : vector<32x2xf32>
    %cst_5 = arith.constant 0.000000e+00 : f32
    %6 = vector.broadcast %cst_5 : f32 to vector<32x2xf32>
    %7 = arith.maximumf %5, %6 : vector<32x2xf32>
    %c0_6 = arith.constant 0 : index
    %c0_7 = arith.constant 0 : index
    %8 = vector.load %arg4[%c0_6, %c0_7] : memref<8x32xf32, #tpu.memory_space<vmem>>, vector<8x32xf32>
    %cst_8 = arith.constant dense<0.000000e+00> : vector<8x2xf32>
    %9 = tpu.matmul %8, %7, %cst_8 {dimension_numbers = #tpu.dot_dimension_numbers<[1], [0], [0], [1], [0, 0, 1, 1], [], []>} : vector<8x32xf32>, vector<32x2xf32>, vector<8x2xf32> -> vector<8x2xf32>
    %c0_9 = arith.constant 0 : index
    %c0_10 = arith.constant 0 : index
    %10 = vector.load %arg5[%c0_9, %c0_10] : memref<8x1xf32, #tpu.memory_space<vmem>>, vector<8x1xf32>
    %11 = vector.broadcast %10 : vector<8x1xf32> to vector<8x2xf32>
    %12 = arith.addf %9, %11 : vector<8x2xf32>
    %c0_11 = arith.constant 0 : index
    %c0_12 = arith.constant 0 : index
    %13 = vector.load %arg6[%c0_11, %c0_12] : memref<8x2xf32, #tpu.memory_space<vmem>>, vector<8x2xf32>
    tpu.vector_store %arg6[%c0_11, %c0_12], %12 {strides = array<i32>} : memref<8x2xf32, #tpu.memory_space<vmem>>, vector<8x2xf32>,
    return
  }
  func.func @transform_0(%arg0: i32) -> (i32, i32) {
    %c0_i32 = arith.constant 0 : i32
    %c0_i32_0 = arith.constant 0 : i32
    return %c0_i32, %arg0 : i32, i32
  }
  func.func @transform_1(%arg0: i32) -> (i32, i32) {
    %c0_i32 = arith.constant 0 : i32
    %c0_i32_0 = arith.constant 0 : i32
    %c0_i32_1 = arith.constant 0 : i32
    return %c0_i32, %c0_i32_0 : i32, i32
  }
  func.func @transform_2(%arg0: i32) -> (i32, i32) {
    %c0_i32 = arith.constant 0 : i32
    %c0_i32_0 = arith.constant 0 : i32
    %c0_i32_1 = arith.constant 0 : i32
    return %c0_i32, %c0_i32_0 : i32, i32
  }
  func.func @transform_3(%arg0: i32) -> (i32, i32) {
    %c0_i32 = arith.constant 0 : i32
    %c0_i32_0 = arith.constant 0 : i32
    %c0_i32_1 = arith.constant 0 : i32
    return %c0_i32, %c0_i32_0 : i32, i32
  }
  func.func @transform_4(%arg0: i32) -> (i32, i32) {
    %c0_i32 = arith.constant 0 : i32
    %c0_i32_0 = arith.constant 0 : i32
    %c0_i32_1 = arith.constant 0 : i32
    return %c0_i32, %c0_i32_0 : i32, i32
  }
  func.func @transform_5(%arg0: i32) -> (i32, i32) {
    %c0_i32 = arith.constant 0 : i32
    %c0_i32_0 = arith.constant 0 : i32
    return %c0_i32, %arg0 : i32, i32
  }
}

</mosaic_0001>

<llo_original>
// kernel: tpu_custom_call.1
$region0: #{tpu_custom_call.1}
  #allocation0 [shape = 'u32[]', space=smem, size = 0x4, offset = 0x4, fixed_abs, tag = 'smem constant byte address 0x4 - core index']
  #allocation1 [shape = 'u32[72,128]{1,0:T(1,128)}', space=vmem, size = 0x9000, scoped, tag = 'internal scratch']
  %s0 = inlined_call_operand.vmem [shape: f32[16,2], index: 0, kind: input, shape index: {}]
  %s1 = inlined_call_operand.vmem [shape: f32[32,16], index: 1, kind: input, shape index: {}]
  %s2 = inlined_call_operand.vmem [shape: f32[32,1], index: 2, kind: input, shape index: {}]
  %s3 = inlined_call_operand.vmem [shape: f32[8,32], index: 3, kind: input, shape index: {}]
  %s4 = inlined_call_operand.vmem [shape: f32[8,1], index: 4, kind: input, shape index: {}]
  %s5 = inlined_call_operand.vmem [shape: f32[8,2], index: 5, kind: output, shape index: {}]
  %s6 = sld [smem:[#allocation0]]
  $region30: #{tpu_custom_call.1} parent=0
    _
  %s8 = ssub.s32 1, %s6
  %s9 = scalar_select 0, %s8, %s6
  // Predicated region
  $region2: #{tpu_custom_call.1} parent=0 // pred_check
    _
  $region3: #{tpu_custom_call.1} parent=0 // pred_check_branch
    %11 = sbr.rel (0) target = $region5
  $region4: #{tpu_custom_call.1} parent=0 // pred_region
    _
  $region5: #{tpu_custom_call.1} parent=0 // pred_fallthru
    _
  // Predicated region
  $region6: #{tpu_custom_call.1} parent=0 // pred_check
    _
  $region7: #{tpu_custom_call.1} parent=0 // pred_check_branch
    %13 = sbr.rel (0) target = $region9
  $region8: #{tpu_custom_call.1} parent=0 // pred_region
    _
  $region9: #{tpu_custom_call.1} parent=0 // pred_fallthru
    _
  // Predicated region
  $region10: #{tpu_custom_call.1} parent=0 // pred_check
    _
  $region11: #{tpu_custom_call.1} parent=0 // pred_check_branch
    %15 = sbr.rel (0) target = $region13
  $region12: #{tpu_custom_call.1} parent=0 // pred_region
    _
  $region13: #{tpu_custom_call.1} parent=0 // pred_fallthru
    _
  // Predicated region
  $region14: #{tpu_custom_call.1} parent=0 // pred_check
    _
  $region15: #{tpu_custom_call.1} parent=0 // pred_check_branch
    %17 = sbr.rel (0) target = $region17
  $region16: #{tpu_custom_call.1} parent=0 // pred_region
    _
  $region17: #{tpu_custom_call.1} parent=0 // pred_fallthru
    _
  // Predicated region
  $region18: #{tpu_custom_call.1} parent=0 // pred_check
    _
  $region19: #{tpu_custom_call.1} parent=0 // pred_check_branch
    %19 = sbr.rel (0) target = $region21
  $region20: #{tpu_custom_call.1} parent=0 // pred_region
    _
  $region21: #{tpu_custom_call.1} parent=0 // pred_fallthru
    _
  %v20 = vld [vmem:[%s1] sm:$0xff]
  %v21 = vld [vmem:[%s1 + $0x8] sm:$0xff]
  %v22 = vld [vmem:[%s1 + $0x10] sm:$0xff]
  %v23 = vld [vmem:[%s1 + $0x18] sm:$0xff]
  %v24 = vld [vmem:[%s0] sm:$0xff]
  %v25 = vld [vmem:[%s0 + $0x8] sm:$0xff]
  %v26 = vld [vmem:[%s2] sm:$0xff]
  %v27 = vld [vmem:[%s2 + $0x8] sm:$0xff]
  %v28 = vld [vmem:[%s2 + $0x10] sm:$0xff]
  %v29 = vld [vmem:[%s2 + $0x18] sm:$0xff]
  %31 = vset.pattern.permute.xlu0 0
  %32 = vperm.xlu0 %31, %v26
  %v33 = vpop.permute.xlu0 %32
  %36 = vset.pattern.permute.xlu0 0
  %37 = vperm.xlu0 %36, %v27
  %v38 = vpop.permute.xlu0 %37
  %41 = vset.pattern.permute.xlu0 0
  %42 = vperm.xlu0 %41, %v28
  %v43 = vpop.permute.xlu0 %42
  %46 = vset.pattern.permute.xlu0 0
  %47 = vperm.xlu0 %46, %v29
  %v48 = vpop.permute.xlu0 %47
  %vm50 = vcmask 130048
  %v52 = vsel %vm50, %v20, 0
  %v55 = vsel %vm50, %v21, 0
  %v58 = vsel %vm50, %v22, 0
  %v61 = vsel %vm50, %v23, 0
  %63 = vmatpush.msra.mxu0 0.0
  %64 = vmatpush.msra.mxu0 0.0
  %65 = vmatpush.msra.mxu0 0.0
  %66 = vmatpush.msra.mxu0 0.0
  %67 = vmatpush.msra.mxu0 0.0
  %68 = vmatpush.msra.mxu0 0.0
  %69 = vmatpush.msra.mxu0 0.0
  %70 = vmatpush.msra.mxu0 0.0
  %71 = vmatpush.msra.mxu0 0.0
  %72 = vmatpush.msra.mxu0 0.0
  %73 = vmatpush.msra.mxu0 0.0
  %74 = vmatpush.msra.mxu0 0.0
  %75 = vmatpush.msra.mxu0 0.0
  %76 = vmatpush.msra.mxu0 0.0
  %77 = vmatpush.msra.mxu0 %v25
  %78 = vmatpush.msra.mxu0 %v24
  %79 = vmatmul.f32.gmra.mxu0 %v52
  %v80 = vpop.f32.mrf.mxu0
  %v81 = vadd.f32 %v33, %v80
  %82 = vmatmul.f32.gmra.mxu0 %v55
  %v83 = vpop.f32.mrf.mxu0
  %v84 = vadd.f32 %v38, %v83
  %85 = vmatmul.f32.gmra.mxu0 %v58
  %v86 = vpop.f32.mrf.mxu0
  %v87 = vadd.f32 %v43, %v86
  %88 = vmatmul.f32.gmra.mxu0 %v61
  %v89 = vpop.f32.mrf.mxu0
  %v90 = vadd.f32 %v48, %v89
  %91 = vdwg.mxu0
  %v92 = vmax.f32 %v81, 0.0
  %v93 = vmax.f32 %v84, 0.0
  %v94 = vmax.f32 %v87, 0.0
  %v95 = vmax.f32 %v90, 0.0
  %v96 = vld [vmem:[%s3] sm:$0xff]
  %v97 = vld [vmem:[%s4] sm:$0xff]
  %99 = vset.pattern.permute.xlu0 0
  %100 = vperm.xlu0 %99, %v97
  %v101 = vpop.permute.xlu0 %100
  %vm103 = vcmask 261120
  %v105 = vsel %vm103, %v96, 0
  %107 = vmatpush.msra.mxu0 0.0
  %108 = vmatpush.msra.mxu0 0.0
  %109 = vmatpush.msra.mxu0 0.0
  %110 = vmatpush.msra.mxu0 0.0
  %111 = vmatpush.msra.mxu0 0.0
  %112 = vmatpush.msra.mxu0 0.0
  %113 = vmatpush.msra.mxu0 0.0
  %114 = vmatpush.msra.mxu0 0.0
  %115 = vmatpush.msra.mxu0 0.0
  %116 = vmatpush.msra.mxu0 0.0
  %117 = vmatpush.msra.mxu0 0.0
  %118 = vmatpush.msra.mxu0 0.0
  %119 = vmatpush.msra.mxu0 %v95
  %120 = vmatpush.msra.mxu0 %v94
  %121 = vmatpush.msra.mxu0 %v93
  %122 = vmatpush.msra.mxu0 %v92
  %123 = vmatmul.f32.gmra.mxu0 %v105
  %v124 = vpop.f32.mrf.mxu0
  %v125 = vadd.f32 %v101, %v124
  %126 = vdwg.mxu0
  %vm127 = vcmask 15360
  %128 = vst.msk [vmem:[%s5] sm:$0xff] %vm127, %v125
  // Predicated region
  $region22: #{tpu_custom_call.1} parent=0 // pred_check
    _
  $region23: #{tpu_custom_call.1} parent=0 // pred_check_branch
    %130 = sbr.rel (0) target = $region25
  $region24: #{tpu_custom_call.1} parent=0 // pred_region
    _
  $region25: #{tpu_custom_call.1} parent=0 // pred_fallthru
    _
  // Predicated region
  $region26: #{tpu_custom_call.1} parent=0 // pred_check
    _
  $region27: #{tpu_custom_call.1} parent=0 // pred_check_branch
    %132 = sbr.rel (0) target = $region29
  $region28: #{tpu_custom_call.1} parent=0 // pred_region
    _
  $region29: #{tpu_custom_call.1} parent=0 // pred_fallthru
    _

</llo_original>
